<compile_context>
chip_gen: v5e
topology: v5e:2x2
jax: 0.10.0
libtpu: 0.0.40
codegen_flags: <defaults>
</compile_context>

<pallas_src>
import numpy as np
import jax
import jax.numpy as jnp
from jax import lax
from jax.experimental import pallas as pl
from jax.experimental.pallas import tpu as pltpu  # noqa: F401  (kept for the TODO tiling above)

# ----------------------------- hyper-parameters ------------------------------
HIDDEN = 32          # config.hidden_size (memory_dim == hidden_dim, compressed=False)
VOCAB = 256          # config.vocab_size
MAX_MEM_LEN = 32     # max_memory_length
MAX_NUM_MEM = 512    # max_num_memories
MAX_RETRIEVAL = 128
SIM_BUF = 3
CONT_BUF = 2
WINDOW = 32
GAMMA = 2.0
MIN_EVENT_SIZE = 3

# =============================== Pallas kernels ===============================


def surprise_gram_kernel(q_ref, w_ref, ent_ref, gram_ref):
    """Fused clustering-entropy ("surprise") + per-batch Gram matrices.

    q_ref:    (B, N, D) f32
    w_ref:    (D, V)    bf16 (pre-cast clustering weight)
    ent_ref:  (B, N)    f32  lane-dense entropy output
    gram_ref: (B, N, N) f32  q @ q^T per batch (feeds boundary refinement)
    """
    q = q_ref[...]                                            # (B, N, D) f32
    B, N, D = q.shape
    # one 2-D (B*N, D) @ (D, V) MXU matmul (no (B, D, V) broadcast), f32 accumulation
    logits = jnp.dot(q.reshape(B * N, D).astype(jnp.bfloat16), w_ref[...],
                     preferred_element_type=jnp.float32).reshape(B, N, -1)
    # entropy of softmax, f32 math:  H = log(sum e) - sum(e * shifted) / sum(e)
    m = jnp.max(logits, axis=-1, keepdims=True)
    s = logits - m
    e = jnp.exp(s)
    denom = jnp.sum(e, axis=-1)                               # (B, N)
    num = jnp.sum(e * s, axis=-1)                             # (B, N)
    ent_ref[...] = jnp.log(denom) - num / denom               # exact divide (correctness note)
    # per-batch Gram: bf16 operands, f32 accumulation
    q_bf = q.astype(jnp.bfloat16)
    gram_ref[...] = jnp.einsum('bnd,bmd->bnm', q_bf, q_bf,
                               preferred_element_type=jnp.float32)


def retrieval_scores_kernel(q_ref, kpt_ref, w_ref, b_ref, o_ref):
    """query-mean -> similarity projection -> scores against cached projected keys.

    q_ref:   (B, N, D)          f32   (mean over N folded into the kernel)
    kpt_ref: (D, MAX_RETRIEVAL) bf16  cached TRANSPOSED projected keys (lane-dense RHS)
    w_ref:   (D, D)             bf16
    b_ref:   (1, D)             f32
    o_ref:   (B, MAX_RETRIEVAL) f32   lane-dense scores
    """
    qm = jnp.mean(q_ref[...], axis=1)                         # (B, D) f32
    qp = jnp.dot(qm.astype(jnp.bfloat16), w_ref[...],
                 preferred_element_type=jnp.float32) + b_ref[...]
    o_ref[...] = jnp.dot(qp.astype(jnp.bfloat16), kpt_ref[...],
                         preferred_element_type=jnp.float32)


def storage_mlp_kernel(x_ref, w1_ref, b1_ref, w2_ref, b2_ref, o_ref):
    # x_ref: (rows, D) -> Linear(D,D) + ReLU + Linear(D,D); bf16 MXU, f32 accumulate
    x = x_ref[...].astype(jnp.bfloat16)
    h = jnp.dot(x, w1_ref[...], preferred_element_type=jnp.float32) + b1_ref[...]
    h = jnp.maximum(h, 0.0)
    o_ref[...] = jnp.dot(h.astype(jnp.bfloat16), w2_ref[...],
                         preferred_element_type=jnp.float32) + b2_ref[...]


# ======================== device-resident fixed-shape ops =====================


def compute_surprise_threshold(surprise):
    # replicate-pad on the left, sliding windows of WINDOW, mu + gamma * sigma (ddof=0)
    B, N = surprise.shape
    pad = jnp.repeat(surprise[:, :1], WINDOW - 1, axis=1)
    padded = jnp.concatenate([pad, surprise], axis=1)
    idx = np.arange(N)[:, None] + np.arange(WINDOW)[None, :]   # static index table
    windows = padded[:, idx]                                   # (B, N, WINDOW)
    mu = jnp.mean(windows, axis=2)
    sigma = jnp.std(windows, axis=2)                           # unbiased=False
    return mu + GAMMA * sigma


def extend_attention_mask(attention_mask, seq_len, key_len):
    B = attention_mask.shape[0]
    memory_len = key_len - seq_len
    memory_mask = jnp.zeros((B, seq_len, memory_len), jnp.float32)
    mask = attention_mask.astype(jnp.float32)
    if mask.ndim == 2:
        mask = jnp.broadcast_to(mask[:, None, :], (B, seq_len, mask.shape[-1]))
    extended = jnp.concatenate([memory_mask, mask], axis=2)
    causal = jnp.tril(jnp.ones((seq_len, key_len), jnp.float32))
    causal = jnp.broadcast_to(causal[None], (B, seq_len, key_len))
    combined = extended * causal
    return (1.0 - combined) * -1000000000.0


# ============================ jitted device pipelines ==========================


@jax.jit
def _surprise_boundaries(query, w_cluster_bf):
    """Fused Pallas kernel + rolling threshold + boundary compare: ONE launch path."""
    B, N, _ = query.shape
    ent, gram = pl.pallas_call(
        surprise_gram_kernel,
        out_shape=(jax.ShapeDtypeStruct((B, N), jnp.float32),
                   jax.ShapeDtypeStruct((B, N, N), jnp.float32)),
    )(query, w_cluster_bf)
    threshold = compute_surprise_threshold(ent)
    boundaries = (ent > threshold).astype(jnp.float32)
    return boundaries, gram


@jax.jit
def _retrieval_core(query, keys_proj_t, memory_values, memory_timestamps, num_mem,
                    w_sim_bf, b_sim, w_store1_bf, b_store1, w_store2_bf, b_store2):
    """Shape-static retrieval: scores kernel -> masked top_k -> gathers -> storage MLP."""
    B, N, D = query.shape
    kp_t = keys_proj_t[:, :MAX_RETRIEVAL]                      # (D, 128) bf16
    values = memory_values[:MAX_RETRIEVAL]                     # (128, L, D)
    ts = memory_timestamps[:MAX_RETRIEVAL]                     # (128,)

    scores = pl.pallas_call(
        retrieval_scores_kernel,
        out_shape=jax.ShapeDtypeStruct((B, MAX_RETRIEVAL), jnp.float32),
    )(query, kp_t, w_sim_bf, b_sim)

    # mask slots beyond num_mem to -inf so padded (zero) memories are never selected
    valid = jnp.arange(MAX_RETRIEVAL, dtype=jnp.int32) < num_mem
    scores = jnp.where(valid[None, :], scores, -jnp.inf)
    _, top_idx = lax.top_k(scores, SIM_BUF)                    # (B, SIM_BUF)
    sim_buf = jnp.take(values, top_idx, axis=0).reshape(B, SIM_BUF * MAX_MEM_LEN, D)

    cur_ts = jnp.take(ts, num_mem - 1)                         # timestamps[:num_mem][-1]
    tsim = jnp.where(valid, -jnp.abs(ts - cur_ts), -jnp.inf)
    _, t_idx = lax.top_k(tsim, CONT_BUF)                       # (CONT_BUF,)
    cont_sel = jnp.take(values, t_idx, axis=0)                 # (CONT_BUF, L, D)
    cont_buf = jnp.broadcast_to(cont_sel[None], (B, CONT_BUF, MAX_MEM_LEN, D))
    cont_buf = cont_buf.reshape(B, CONT_BUF * MAX_MEM_LEN, D)

    # storage MLP runs ONCE on the concatenated buffers (one launch, static rows)
    combined = jnp.concatenate([sim_buf.reshape(-1, D), cont_buf.reshape(-1, D)], axis=0)
    rows = combined.shape[0]
    out = pl.pallas_call(
        storage_mlp_kernel,
        out_shape=jax.ShapeDtypeStruct((rows, D), jnp.float32),
    )(combined, w_store1_bf, b_store1, w_store2_bf, b_store2)

    sim_rows = B * SIM_BUF * MAX_MEM_LEN
    sim_out = out[:sim_rows].reshape(B, SIM_BUF * MAX_MEM_LEN, D)
    cont_out = out[sim_rows:].reshape(B, CONT_BUF * MAX_MEM_LEN, D)
    return sim_out, cont_out


@jax.jit
def _assemble(sim_buf, cont_buf, key, value, attention_mask):
    key_ctx = jnp.concatenate([sim_buf, cont_buf, key], axis=1)
    val_ctx = jnp.concatenate([sim_buf, cont_buf, value], axis=1)
    mask = extend_attention_mask(attention_mask, key.shape[1], key_ctx.shape[1])
    return key_ctx, val_ctx, mask


# ======================= host-side glue: dynamic-shape bookkeeping ============


def compute_modularity_batch(sim, boundaries):
    degrees = sim.sum(axis=2)                                  # [P, N]
    total = degrees.sum(axis=1, keepdims=True)                 # [P, 1]
    communities = np.cumsum(boundaries, axis=1).astype(np.int64)
    expected = degrees[:, :, None] * degrees[:, None, :] / (total[:, :, None] + 1e-10)
    mod = sim - expected
    mask = (communities[:, :, None] == communities[:, None, :]).astype(np.float32)
    return (mod * mask).sum(axis=(1, 2)) / (total[:, 0] + 1e-10)


def compute_conductance_batch(sim, boundaries):
    P, N, _ = sim.shape
    degrees = sim.sum(axis=2)
    total_volumes = degrees.sum(axis=1)
    communities = np.cumsum(boundaries, axis=1).astype(np.int64)
    num_communities = communities.max(axis=1) + 1
    C = N + 1  # static upper bound on #communities; extra columns are zero and masked out
    one_hot = np.eye(C, dtype=np.float32)[communities]         # [P, N, C]
    volumes = np.einsum('pnc,pn->pc', one_hot, degrees)
    inter = np.einsum('pnc,pnm,pmd->pcd', one_hot, sim, one_hot)
    inter[:, np.arange(C), np.arange(C)] = 0.0
    cuts = inter.sum(axis=2)
    min_volumes = np.minimum(volumes, total_volumes[:, None] - volumes)
    cond = cuts / (min_volumes + 1e-10)
    valid = (np.arange(C)[None, :] < num_communities[:, None]).astype(np.float32)
    cond = cond * valid
    return cond.sum(axis=1) / num_communities.astype(np.float32)


def enforce_minimum_event_size(boundaries):
    B, N = boundaries.shape
    boundaries = boundaries.copy()
    event_labels = np.cumsum(boundaries, axis=1).astype(np.int64)
    num_events = event_labels.max(axis=1) + 1
    max_num_events = int(num_events.max())
    event_sizes = np.zeros((B, max_num_events), dtype=np.float32)
    rows_idx = np.repeat(np.arange(B), N).reshape(B, N)
    np.add.at(event_sizes, (rows_idx, event_labels), 1.0)
    small = event_sizes < MIN_EVENT_SIZE
    small_idx = np.argwhere(small)
    padded = np.concatenate([np.zeros((B, 1), dtype=np.int64), event_labels], axis=1)
    diff = np.diff(padded, axis=1)
    bnd_pos = np.argwhere(diff == 1)
    bppe = np.full((B, max_num_events), -1, dtype=np.int64)
    if bnd_pos.shape[0] > 0:
        bppe[bnd_pos[:, 0], event_labels[bnd_pos[:, 0], bnd_pos[:, 1]]] = bnd_pos[:, 1]
    if small_idx.shape[0] > 0:
        se_bp = bppe[small_idx[:, 0], small_idx[:, 1]]
        valid = se_bp >= 0
        boundaries[small_idx[valid][:, 0], se_bp[valid]] = 0.0
    return boundaries


def refine_boundaries(boundaries, sim_matrices):
    refined = boundaries.copy()
    cur_mod = compute_modularity_batch(sim_matrices, boundaries)
    cur_cond = compute_conductance_batch(sim_matrices, boundaries)
    bpos = np.argwhere(boundaries == 1.0)
    if bpos.shape[0] == 0:
        return enforce_minimum_event_size(refined)
    P = bpos.shape[0]
    bi, pos = bpos[:, 0], bpos[:, 1]
    temp = boundaries[bi].copy()
    temp[np.arange(P), pos] = 0.0
    sim_exp = sim_matrices[bi]
    new_mod = compute_modularity_batch(sim_exp, temp)
    new_cond = compute_conductance_batch(sim_exp, temp)
    improvements = (new_mod > cur_mod[bi]) | (new_cond < cur_cond[bi])
    refined[bi[improvements], pos[improvements]] = 0.0
    return enforce_minimum_event_size(refined)


def store_events(query_np, boundaries_np, timestamp, state, params):
    """Host: group tokens into events (dynamic shapes).  Device: scatter into the
    resident circular buffers and cache the similarity-projected keys (transposed bf16)."""
    B, N, D = query_np.shape
    boundaries_ext = np.concatenate(
        [boundaries_np, np.ones((B, 1), dtype=boundaries_np.dtype)], axis=1)
    event_labels = np.cumsum(boundaries_ext, axis=1)[:, :-1].astype(np.int64)
    flat_tokens = query_np.reshape(-1, D)
    flat_labels = event_labels.reshape(-1)
    flat_batch = np.repeat(np.arange(B), N)
    max_event_label = int(event_labels.max()) + 1
    ids = flat_batch * max_event_label + flat_labels
    unique_ids, inverse = np.unique(ids, return_inverse=True)
    num_events = unique_ids.shape[0]
    counts = np.bincount(inverse, minlength=num_events)
    order = np.argsort(inverse, kind='stable')   # stable => tokens kept in sequence order
    starts = np.concatenate([[0], np.cumsum(counts)[:-1]])
    pos_in_events = np.zeros_like(inverse)
    pos_in_events[order] = np.arange(inverse.shape[0]) - np.repeat(starts, counts)
    max_event_length = int(counts.max())
    events = np.zeros((num_events, max_event_length, D), dtype=np.float32)
    events[inverse, pos_in_events] = flat_tokens
    if max_event_length < MAX_MEM_LEN:
        pad = np.zeros((num_events, MAX_MEM_LEN - max_event_length, D), dtype=np.float32)
        events = np.concatenate([events, pad], axis=1)
    elif max_event_length > MAX_MEM_LEN:
        events = events[:, :MAX_MEM_LEN, :]

    # ---- device-resident circular-buffer update (reference store_event) ----
    indices = (np.arange(num_events) + state["memory_index"]) % MAX_NUM_MEM
    idx_dev = jnp.asarray(indices, dtype=jnp.int32)
    events_dev = jnp.asarray(events)                            # small H2D (few KB)
    keys = events_dev[:, 0, :]                                  # representative tokens
    # project keys through the similarity Linear ONCE at store time (f32), cache
    # TRANSPOSED + bf16 so the retrieval kernel gets a lane-dense bf16 RHS.
    keys_proj = jnp.dot(keys, params["w_sim"]) + params["b_sim"]
    state["memory_values"] = state["memory_values"].at[idx_dev].set(events_dev)
    state["memory_keys"] = state["memory_keys"].at[idx_dev].set(keys)   # fidelity only
    state["memory_keys_proj_t"] = state["memory_keys_proj_t"].at[:, idx_dev].set(
        keys_proj.T.astype(jnp.bfloat16))
    state["memory_timestamps"] = state["memory_timestamps"].at[idx_dev].set(
        jnp.float32(timestamp))
    state["memory_index"] = (state["memory_index"] + num_events) % MAX_NUM_MEM


# ================================ forward =====================================


def praxis_memory_forward(query, key, value, attention_mask, params, state,
                          target_tokens=None):
    B, N, D = query.shape
    timestamp = state["current_timestamp"]
    state["current_timestamp"] += 1

    # TODO(synk): compute_surprise_with_targets path (target_tokens is not None) not implemented.

    # one jit: fused Pallas (entropy + Gram) + rolling threshold + boundary compare
    boundaries_dev, gram_dev = _surprise_boundaries(query, params["w_cluster_bf"])

    # single device->host sync for the dynamic-shape episodic bookkeeping
    boundaries_np, gram_np, query_np = jax.device_get((boundaries_dev, gram_dev, query))
    refined = refine_boundaries(boundaries_np, gram_np)

    # store episodic events into the DEVICE-resident circular buffers
    store_events(query_np, refined, timestamp, state, params)

    if state["memory_index"] == 0:            # mirrors the reference (only after a wrap)
        return query, key, value, attention_mask

    # shape-static retrieval + storage MLP (one jit, one compile for the whole lifetime)
    num_memories = min(state["memory_index"], MAX_NUM_MEM, MAX_RETRIEVAL)
    sim_out, cont_out = _retrieval_core(
        query, state["memory_keys_proj_t"], state["memory_values"],
        state["memory_timestamps"], np.int32(num_memories),
        params["w_sim_bf"], params["b_sim"],
        params["w_store1_bf"], params["b_store1"],
        params["w_store2_bf"], params["b_store2"])

    # reference semantics: only k = min(SIM_BUF, num_memories) similarity memories and
    # k_t = min(CONT_BUF, num_memories) contiguity memories enter the context (padding
    # rows, produced only on the first forward or two, are sliced away here).
    k = min(SIM_BUF, num_memories)
    k_t = min(CONT_BUF, num_memories)
    if k < SIM_BUF:
        sim_out = sim_out[:, :k * MAX_MEM_LEN]
    if k_t < CONT_BUF:
        cont_out = cont_out[:, :k_t * MAX_MEM_LEN]

    key, value, attention_mask = _assemble(sim_out, cont_out, key, value, attention_mask)
    return query, key, value, attention_mask


# =========================== parameters / state ===============================


def init_params(rng):
    ks = jax.random.split(rng, 5)
    s = 0.05
    w_cluster = jax.random.normal(ks[0], (HIDDEN, VOCAB), jnp.float32) * s
    w_store1 = jax.random.normal(ks[1], (HIDDEN, HIDDEN), jnp.float32) * s
    w_store2 = jax.random.normal(ks[2], (HIDDEN, HIDDEN), jnp.float32) * s
    w_sim = jax.random.normal(ks[3], (HIDDEN, HIDDEN), jnp.float32) * s
    b_sim = jax.random.normal(ks[4], (1, HIDDEN), jnp.float32) * s
    return {
        # f32 masters
        "w_cluster": w_cluster,                                   # Linear(D, V, bias=False)
        "w_store1": w_store1, "b_store1": jnp.zeros((1, HIDDEN), jnp.float32),
        "w_store2": w_store2, "b_store2": jnp.zeros((1, HIDDEN), jnp.float32),
        "w_sim": w_sim, "b_sim": b_sim,
        # bf16 copies pre-cast ONCE (halves weight DMA, removes in-kernel casts)
        "w_cluster_bf": w_cluster.astype(jnp.bfloat16),
        "w_store1_bf": w_store1.astype(jnp.bfloat16),
        "w_store2_bf": w_store2.astype(jnp.bfloat16),
        "w_sim_bf": w_sim.astype(jnp.bfloat16),
        # note: compress/decompress (compressed=False) and the unused `surprise` MLP are
        # never exercised by this forward path, so they are not instantiated.
    }


def init_state():
    return {
        # DEVICE-resident circular buffers (functional updates)
        "memory_keys": jnp.zeros((MAX_NUM_MEM, HIDDEN), jnp.float32),
        "memory_keys_proj_t": jnp.zeros((HIDDEN, MAX_NUM_MEM), jnp.bfloat16),
        "memory_values": jnp.zeros((MAX_NUM_MEM, MAX_MEM_LEN, HIDDEN), jnp.float32),
        "memory_timestamps": jnp.zeros((MAX_NUM_MEM,), jnp.float32),
        "memory_index": 0,
        "current_timestamp": 0,
    }


if __name__ == "__main__":
    root = jax.random.PRNGKey(0)
    kq, kk, kv, kp = jax.random.split(root, 4)
    B, N, D = 2, 8, HIDDEN
    query = jax.random.normal(kq, (B, N, D), jnp.float32)
    key = jax.random.normal(kk, (B, N, D), jnp.float32)
    value = jax.random.normal(kv, (B, N, D), jnp.float32)
    attention_mask = jnp.ones((B, N), jnp.float32)

    params = init_params(kp)
    state = init_state()

    # first call stores then retrieves the freshly stored events; second call exercises
    # retrieval against an accumulated memory bank.  All three Pallas kernels run on both.
    out1 = praxis_memory_forward(query, key, value, attention_mask, params, state)
    out2 = praxis_memory_forward(query, key, value, attention_mask, params, state)
    jax.block_until_ready(out1)
    jax.block_until_ready(out2)
    print("KERNEL_OK")
</pallas_src>

<mosaic_0001>
module attributes {stable_mosaic.version = 11 : i64} {
  func.func @surprise_gram_kernel(%arg0: memref<2x8x32xf32, #tpu.memory_space<vmem>>, %arg1: memref<32x256xbf16, #tpu.memory_space<vmem>>, %arg2: memref<2x8xf32, #tpu.memory_space<vmem>>, %arg3: memref<2x8x8xf32, #tpu.memory_space<vmem>>) attributes {dimension_semantics = [], scalar_prefetch = 0 : i64, scratch_operands = 0 : i64, tpu.core_type = #tpu.core_type<tc>} {
    %c0 = arith.constant 0 : index
    %c0_0 = arith.constant 0 : index
    %c0_1 = arith.constant 0 : index
    %0 = vector.load %arg0[%c0, %c0_0, %c0_1] : memref<2x8x32xf32, #tpu.memory_space<vmem>>, vector<2x8x32xf32>
    %1 = vector.shape_cast %0 : vector<2x8x32xf32> to vector<16x32xf32>
    %2 = arith.truncf %1 : vector<16x32xf32> to vector<16x32xbf16>
    %c0_2 = arith.constant 0 : index
    %c0_3 = arith.constant 0 : index
    %3 = vector.load %arg1[%c0_2, %c0_3] : memref<32x256xbf16, #tpu.memory_space<vmem>>, vector<32x256xbf16>
    %cst = arith.constant dense<0.000000e+00> : vector<16x256xf32>
    %4 = tpu.matmul %2, %3, %cst {dimension_numbers = #tpu.dot_dimension_numbers<[1], [0], [0], [1], [0, 0, 1, 1], [], []>} : vector<16x32xbf16>, vector<32x256xbf16>, vector<16x256xf32> -> vector<16x256xf32>
    %5 = vector.shape_cast %4 : vector<16x256xf32> to vector<2x8x256xf32>
    %cst_4 = arith.constant dense<0xFF800000> : vector<2x8xf32>
    %6 = vector.multi_reduction <maximumf>, %5, %cst_4 [2] : vector<2x8x256xf32> to vector<2x8xf32>
    %7 = vector.shape_cast %6 : vector<2x8xf32> to vector<2x8x1xf32>
    %8 = vector.broadcast %7 : vector<2x8x1xf32> to vector<2x8x256xf32>
    %9 = arith.subf %5, %8 : vector<2x8x256xf32>
    %10 = math.exp %9 : vector<2x8x256xf32>
    %cst_5 = arith.constant dense<0.000000e+00> : vector<2x8xf32>
    %11 = vector.multi_reduction <add>, %10, %cst_5 [2] : vector<2x8x256xf32> to vector<2x8xf32>
    %12 = arith.mulf %10, %9 : vector<2x8x256xf32>
    %cst_6 = arith.constant dense<0.000000e+00> : vector<2x8xf32>
    %13 = vector.multi_reduction <add>, %12, %cst_6 [2] : vector<2x8x256xf32> to vector<2x8xf32>
    %14 = math.log %11 : vector<2x8xf32>
    %15 = arith.divf %13, %11 : vector<2x8xf32>
    %16 = arith.subf %14, %15 : vector<2x8xf32>
    %c0_7 = arith.constant 0 : index
    %c0_8 = arith.constant 0 : index
    %17 = vector.load %arg2[%c0_7, %c0_8] : memref<2x8xf32, #tpu.memory_space<vmem>>, vector<2x8xf32>
    tpu.vector_store %arg2[%c0_7, %c0_8], %16 {strides = array<i32>} : memref<2x8xf32, #tpu.memory_space<vmem>>, vector<2x8xf32>,
    %18 = arith.truncf %0 : vector<2x8x32xf32> to vector<2x8x32xbf16>
    "tpu.trace_start"() <{level = 10 : i32, message = "bnd,bmd->bnm"}> : () -> ()
    %cst_9 = arith.constant dense<0.000000e+00> : vector<2x8x8xf32>
    %19 = tpu.matmul %18, %18, %cst_9 {dimension_numbers = #tpu.dot_dimension_numbers<[2], [2], [1], [1], [0, 0, 0, 1, 1, 1], [0], [0]>} : vector<2x8x32xbf16>, vector<2x8x32xbf16>, vector<2x8x8xf32> -> vector<2x8x8xf32>
    "tpu.trace_stop"() : () -> ()
    %c0_10 = arith.constant 0 : index
    %c0_11 = arith.constant 0 : index
    %c0_12 = arith.constant 0 : index
    %20 = vector.load %arg3[%c0_10, %c0_11, %c0_12] : memref<2x8x8xf32, #tpu.memory_space<vmem>>, vector<2x8x8xf32>
    tpu.vector_store %arg3[%c0_10, %c0_11, %c0_12], %19 {strides = array<i32>} : memref<2x8x8xf32, #tpu.memory_space<vmem>>, vector<2x8x8xf32>,
    return
  }
}

</mosaic_0001>

<llo_original>
// kernel: _surprise_boundaries.1
$region0: #{_surprise_boundaries.1}
  #allocation0 [shape = 'u32[]', space=smem, size = 0x4, offset = 0x4, fixed_abs, tag = 'smem constant byte address 0x4 - core index']
  #allocation1 [shape = 'u32[72,128]{1,0:T(1,128)}', space=vmem, size = 0x9000, scoped, tag = 'internal scratch']
  %s0 = inlined_call_operand.hbm [shape: f32[2,8,32], index: 0, kind: input, shape index: {}]
  %s1 = inlined_call_operand.hbm [shape: bf16[32,256], index: 1, kind: input, shape index: {}]
  %s2 = inlined_call_operand.vmem [shape: f32[2,8], index: 2, kind: output, shape index: {0}]
  %s3 = inlined_call_operand.hbm [shape: f32[2,8,8], index: 3, kind: output, shape index: {1}]
  %4 = xla_tuple %s2, %s3
  %s5 = sld [smem:[#allocation0]]
  $region34: #{_surprise_boundaries.1} parent=0
    _
  %s7 = ssub.s32 1, %s5
  %s8 = scalar_select 0, %s7, %s5
  $region1: #{_surprise_boundaries.1} parent=0
    #allocation2 [shape = 'u8[8192]{0}', space=vmem, size = 0x2000, scoped, tag = 'input window, operand 0, single buffered']
    #allocation3 [shape = 's32[1]{0}', space=sflag, size = 0x4, scoped, tag = 'scoped memory for _surprise_boundaries.1']
    #allocation4 [shape = 's32[1]{0}', space=sflag, size = 0x4, scoped, tag = 'scoped memory for _surprise_boundaries.1']
    #allocation5 [shape = 'u8[16384]{0}', space=vmem, size = 0x4000, scoped, tag = 'input window, operand 1, single buffered']
    #allocation6 [shape = 's32[1]{0}', space=sflag, size = 0x4, scoped, tag = 'scoped memory for _surprise_boundaries.1']
    #allocation7 [shape = 'u8[8192]{0}', space=vmem, size = 0x2000, scoped, tag = 'output window, operand 1, single buffered']
    %9 = vsyncpa [#allocation3], 0
    %10 = vsyncpa [#allocation6], 0
    %11 = vsyncpa [#allocation4], 0
    // Predicated region
    $region2: #{_surprise_boundaries.1} parent=1 // pred_check
      _
    $region3: #{_surprise_boundaries.1} parent=1 // pred_check_branch
      %13 = sbr.rel (0) target = $region5
    $region4: #{_surprise_boundaries.1} parent=1 // pred_region
      %15 = vsyncadd [#allocation3], 0
      %s16 = sshll.u32 %s0, 4
      %s17 = int_to_ptr.hbm [resolvable:$true] %s16
      %s18 = sshll.u32 [#allocation2], 4
      %s19 = int_to_ptr.vmem [resolvable:$true] %s18
      %24 = dma.hbm_to_vmem [thread:$0]  %s17, 256, %s19, [#allocation3], 128, 128, 8
    $region5: #{_surprise_boundaries.1} parent=1 // pred_fallthru
      _
    // Predicated region
    $region6: #{_surprise_boundaries.1} parent=1 // pred_check
      _
    $region7: #{_surprise_boundaries.1} parent=1 // pred_check_branch
      %26 = sbr.rel (0) target = $region9
    $region8: #{_surprise_boundaries.1} parent=1 // pred_region
      %28 = vsyncadd [#allocation6], 0
      %s29 = sshll.u32 %s1, 4
      %s30 = int_to_ptr.hbm [resolvable:$true] %s29
      %s31 = sshll.u32 [#allocation5], 4
      %s32 = int_to_ptr.vmem [resolvable:$true] %s31
      %37 = dma.hbm_to_vmem [thread:$0]  %s30, 512, %s32, [#allocation6], 128, 128, 8
    $region9: #{_surprise_boundaries.1} parent=1 // pred_fallthru
      _
    // Predicated region
    $region10: #{_surprise_boundaries.1} parent=1 // pred_check
      _
    $region11: #{_surprise_boundaries.1} parent=1 // pred_check_branch
      %39 = sbr.rel (0) target = $region13
    $region12: #{_surprise_boundaries.1} parent=1 // pred_region
      %41 = dma.done [#allocation3], 256
    $region13: #{_surprise_boundaries.1} parent=1 // pred_fallthru
      _
    // Predicated region
    $region14: #{_surprise_boundaries.1} parent=1 // pred_check
      _
    $region15: #{_surprise_boundaries.1} parent=1 // pred_check_branch
      %43 = sbr.rel (0) target = $region17
    $region16: #{_surprise_boundaries.1} parent=1 // pred_region
      %45 = dma.done [#allocation6], 512
    $region17: #{_surprise_boundaries.1} parent=1 // pred_fallthru
      _
    %v47 = vld [vmem:[#allocation2] sm:$0xff]
    %v48 = vld [vmem:[#allocation2 + $0x8] sm:$0xff]
    %v49 = vpack.c.bf16 %v48, %v47
    %v50 = vld [vmem:[#allocation5] sm:$0xff]
    %v51 = vld [vmem:[#allocation5 + $0x8] sm:$0xff]
    %v52 = vld [vmem:[#allocation5 + $0x10] sm:$0xff]
    %v53 = vld [vmem:[#allocation5 + $0x18] sm:$0xff]
    %v58 = vunpack.c.l.b16 %v50
    %v59 = vunpack.c.h.b16 %v50
    %v60 = vunpack.c.l.b16 %v51
    %v61 = vunpack.c.h.b16 %v51
    %v62 = vunpack.c.l.b16 %v52
    %v63 = vunpack.c.h.b16 %v52
    %v64 = vunpack.c.l.b16 %v53
    %v65 = vunpack.c.h.b16 %v53
    %v66 = vpack.c.b16 %v60, %v58
    %v67 = vpack.c.b16 %v61, %v59
    %v68 = vpack.c.b16 %v64, %v62
    %v69 = vpack.c.b16 %v65, %v63
    %vm74 = vcmask 261120
    %v76 = vsel %vm74, %v49, 0
    %78 = vmatpush.bf16.msra.mxu0 0
    %79 = vmatpush.bf16.msra.mxu0 0
    %80 = vmatpush.bf16.msra.mxu0 0
    %81 = vmatpush.bf16.msra.mxu0 0
    %82 = vmatpush.bf16.msra.mxu0 0
    %83 = vmatpush.bf16.msra.mxu0 0
    %84 = vmatpush.bf16.msra.mxu0 %v68
    %85 = vmatpush.bf16.msra.mxu0 %v66
    %86 = vmatmul.bf16.gmra.mxu0 %v76
    %v87 = vpop.f32.mrf.mxu0
    %v88 = vadd.f32 0.0, %v87
    %v89 = vpop.f32.mrf.mxu0
    %v90 = vadd.f32 0.0, %v89
    %91 = vdwg.mxu0
    %92 = vmatpush.bf16.msra.mxu0 0
    %93 = vmatpush.bf16.msra.mxu0 0
    %94 = vmatpush.bf16.msra.mxu0 0
    %95 = vmatpush.bf16.msra.mxu0 0
    %96 = vmatpush.bf16.msra.mxu0 0
    %97 = vmatpush.bf16.msra.mxu0 0
    %98 = vmatpush.bf16.msra.mxu0 %v69
    %99 = vmatpush.bf16.msra.mxu0 %v67
    %100 = vmatmul.bf16.gmra.mxu0 %v76
    %v101 = vpop.f32.mrf.mxu0
    %v102 = vadd.f32 0.0, %v101
    %v103 = vpop.f32.mrf.mxu0
    %v104 = vadd.f32 0.0, %v103
    %105 = vdwg.mxu0
    %v106 = vmax.f32 %v88, %v102
    %107 = vmax.xlane.f32.xlu0 %v106
    %v108 = vpop.xlane.xlu0 %107
    %v109 = vmax.f32 %v90, %v104
    %110 = vmax.xlane.f32.xlu0 %v109
    %v111 = vpop.xlane.xlu0 %110
    %v112 = vsub.f32 %v88, %v108
    %v113 = vsub.f32 %v102, %v108
    %v114 = vsub.f32 %v90, %v111
    %v115 = vsub.f32 %v104, %v111
    %v116 = vmul.f32 %v112, 1.442695
    %v117 = vpow.pop %v116
    %v118 = vmul.f32 %v113, 1.442695
    %v119 = vpow.pop %v118
    %v120 = vmul.f32 %v114, 1.442695
    %v121 = vpow.pop %v120
    %v122 = vmul.f32 %v115, 1.442695
    %v123 = vpow.pop %v122
    %v124 = vadd.f32 %v117, %v119
    %125 = vadd.xlane.f32.xlu0 %v124
    %v126 = vpop.xlane.xlu0 %125
    %v127 = vadd.f32 %v121, %v123
    %128 = vadd.xlane.f32.xlu0 %v127
    %v129 = vpop.xlane.xlu0 %128
    %v130 = vmul.f32 %v117, %v112
    %v131 = vmul.f32 %v119, %v113
    %v132 = vmul.f32 %v121, %v114
    %v133 = vmul.f32 %v123, %v115
    %v134 = vadd.f32 %v130, %v131
    %135 = vadd.xlane.f32.xlu0 %v134
    %v136 = vpop.xlane.xlu0 %135
    %v137 = vadd.f32 %v132, %v133
    %138 = vadd.xlane.f32.xlu0 %v137
    %v139 = vpop.xlane.xlu0 %138
    %v140 = vlog2.pop %v126
    %v141 = vmul.f32 %v140, 0.6931472
    %v142 = vlog2.pop %v129
    %v143 = vmul.f32 %v142, 0.6931472
    %v144 = vrcp.pop %v126
    %v145 = vmul.f32 %v126, %v144
    %v146 = vsub.f32 1.0, %v145
    %v147 = vmul.f32 %v144, %v146
    %v148 = vadd.f32 %v144, %v147
    %vm149 = vweird.f32 %v126
    %vm150 = vweird.f32 %v144
    %vm151 = vmor %vm149, %vm150
    %v152 = vsel %vm151, %v144, %v148
    %v153 = vand.u32 2147483647, %v126
    %vm154 = vcmp.eq.f32.partialorder %v153, 8.507059e+37
    %v155 = vand.u32 %v126, 2147483648
    %v156 = vor.u32 1.1754944e-38, %v155
    %v157 = vsel %vm154, %v156, %v152
    %v158 = vmul.f32 %v136, %v157
    %v159 = vrcp.pop %v129
    %v160 = vmul.f32 %v129, %v159
    %v161 = vsub.f32 1.0, %v160
    %v162 = vmul.f32 %v159, %v161
    %v163 = vadd.f32 %v159, %v162
    %vm164 = vweird.f32 %v129
    %vm165 = vweird.f32 %v159
    %vm166 = vmor %vm164, %vm165
    %v167 = vsel %vm166, %v159, %v163
    %v168 = vand.u32 2147483647, %v129
    %vm169 = vcmp.eq.f32.partialorder %v168, 8.507059e+37
    %v170 = vand.u32 %v129, 2147483648
    %v171 = vor.u32 1.1754944e-38, %v170
    %v172 = vsel %vm169, %v171, %v167
    %v173 = vmul.f32 %v139, %v172
    %v174 = vsub.f32 %v141, %v158
    %v175 = vsub.f32 %v143, %v173
    %v178 = vlaneseq
    %v179 = vand.u32 %v178, 127
    %v180 = vperm.slane %v174, %v179
    %v181 = vperm.slane %v175, %v179
    %vm182 = vcmask 1041409
    %v183 = vsel %vm182, %v181, %v180
    %vm185 = vcmask 58368
    %186 = vst.msk [vmem:[%s2] sm:$0x3] %vm185, %v183
    %v187 = vpack.c.bf16 %v47, %v47
    %v188 = vpack.c.bf16 %v48, %v48
    %v190 = vsel %vm74, %v187, 0
    %192 = vmatpush.bf16.xpose.msra.mxu0 0
    %193 = vmatpush.bf16.xpose.msra.mxu0 0
    %194 = vmatpush.bf16.xpose.msra.mxu0 0
    %195 = vmatpush.bf16.xpose.msra.mxu0 0
    %196 = vmatpush.bf16.xpose.msra.mxu0 0
    %197 = vmatpush.bf16.xpose.msra.mxu0 0
    %198 = vmatpush.bf16.xpose.msra.mxu0 0
    %199 = vmatpush.bf16.xpose.msra.mxu0 %v190
    %200 = vmatmul.bf16.gmra.mxu0 %v190
    %v201 = vpop.f32.mrf.mxu0
    %v202 = vadd.f32 0.0, %v201
    %v203 = vpop.f32.mrf.mxu0
    %204 = vdwg.mxu0
    %v206 = vsel %vm74, %v188, 0
    %208 = vmatpush.bf16.xpose.msra.mxu0 0
    %209 = vmatpush.bf16.xpose.msra.mxu0 0
    %210 = vmatpush.bf16.xpose.msra.mxu0 0
    %211 = vmatpush.bf16.xpose.msra.mxu0 0
    %212 = vmatpush.bf16.xpose.msra.mxu0 0
    %213 = vmatpush.bf16.xpose.msra.mxu0 0
    %214 = vmatpush.bf16.xpose.msra.mxu0 0
    %215 = vmatpush.bf16.xpose.msra.mxu0 %v206
    %216 = vmatmul.bf16.gmra.mxu0 %v206
    %v217 = vpop.f32.mrf.mxu0
    %v218 = vadd.f32 0.0, %v217
    %v219 = vpop.f32.mrf.mxu0
    %220 = vdwg.mxu0
    %vm221 = vcmask 64512
    %222 = vst.msk [vmem:[#allocation7] sm:$0xff] %vm221, %v202
    %223 = vst.msk [vmem:[#allocation7 + $0x8] sm:$0xff] %vm221, %v218
    // Predicated region
    $region18: #{_surprise_boundaries.1} parent=1 // pred_check
      _
    $region19: #{_surprise_boundaries.1} parent=1 // pred_check_branch
      %225 = sbr.rel (0) target = $region21
    $region20: #{_surprise_boundaries.1} parent=1 // pred_region
      _
    $region21: #{_surprise_boundaries.1} parent=1 // pred_fallthru
      _
    // Predicated region
    $region22: #{_surprise_boundaries.1} parent=1 // pred_check
      _
    $region23: #{_surprise_boundaries.1} parent=1 // pred_check_branch
      %227 = sbr.rel (0) target = $region25
    $region24: #{_surprise_boundaries.1} parent=1 // pred_region
      %229 = vsyncadd [#allocation4], 0
      %s230 = sshll.u32 [#allocation7], 4
      %s231 = int_to_ptr.vmem [resolvable:$true] %s230
      %s232 = sshll.u32 %s3, 4
      %s233 = int_to_ptr.hbm [resolvable:$true] %s232
      %238 = dma.vmem_to_hbm [thread:$0]  %s231, 256, %s233, [#allocation4], 128, 128, 8
    $region25: #{_surprise_boundaries.1} parent=1 // pred_fallthru
      _
    // Predicated region
    $region26: #{_surprise_boundaries.1} parent=1 // pred_check
      _
    $region27: #{_surprise_boundaries.1} parent=1 // pred_check_branch
      %240 = sbr.rel (0) target = $region29
    $region28: #{_surprise_boundaries.1} parent=1 // pred_region
      _
    $region29: #{_surprise_boundaries.1} parent=1 // pred_fallthru
      _
    // Predicated region
    $region30: #{_surprise_boundaries.1} parent=1 // pred_check
      _
    $region31: #{_surprise_boundaries.1} parent=1 // pred_check_branch
      %242 = sbr.rel (0) target = $region33
    $region32: #{_surprise_boundaries.1} parent=1 // pred_region
      %244 = dma.done [#allocation4], 256
    $region33: #{_surprise_boundaries.1} parent=1 // pred_fallthru
      _
    %245 = vsyncpa [#allocation3], 1
    %246 = vsyncpa [#allocation6], 1
    %247 = vsyncpa [#allocation4], 1

</llo_original>
